<compile_context>
chip_gen: v6e
topology: v6e:2x2x1
jax: 0.10.0
libtpu: 0.0.40
codegen_flags: <defaults>
</compile_context>

<pallas_src>
import numpy as np
import jax
import jax.numpy as jnp
from jax.experimental import pallas as pl
from jax.experimental.pallas import tpu as pltpu  # noqa: F401 (TPU backend assumed)

# ----- config (config.hidden_size = 32) -----
HIDDEN = 32                  # config.hidden_size
SEQ = 16                     # max_n_words
BATCH = 2
MLP_DIM = 2 * HIDDEN         # self.mlp_dim = 64
MLP2 = MLP_DIM // 2          # 32
MLP4 = MLP_DIM // 4          # 16 (biaffine in_features)
N_LABELS = 5
EMB_PAD = 8                  # label table padded 5 -> 8 rows (sublane multiple)
OUT_PAD = 128                # lane-dense output width (logits live in lanes 0:2)
DEL_BEGIN, DEL_END = 0, 50


# =====================  Pallas kernel (single invocation, grid=())  =====================
def _re_decoder_kernel(pool_h_ref, pool_t_ref, hid_ref, emb_ref,
                       w1_ref, w2_ref, bil_ref, cls_ref, bias_ref, out_ref):
    f32 = jnp.float32
    w1 = w1_ref[...]            # (2H, 2*MLP2) = [[W1he | W1te], [W1hl | W1tl]]
    bias = bias_ref[...]        # (3, 128): row0=[b1h|b1t], row1=[b2h|b2t], row2=[bl|0...]

    # ---- FFNN layer 1, re-associated:
    #   h1 = (pool_h @ hidden) @ W1he + (onehot_h @ emb) @ W1hl + b1h
    #      =  pool_h_aug @ concat([hidden @ W1he, emb @ W1hl])  + b1h
    # so the label-embedding "gather" is just one-hot columns of the pooling
    # matrix and layer-1 weights touch (hidden | emb) once, not per relation.
    m_hid = jnp.dot(hid_ref[...], w1[:HIDDEN, :], preferred_element_type=f32)   # (B*S, 64)
    m_emb = jnp.dot(emb_ref[...], w1[HIDDEN:, :], preferred_element_type=f32)   # (8,   64)
    m = jnp.concatenate([m_hid, m_emb], axis=0)                                 # (B*S+8, 64)

    h1 = jnp.dot(pool_h_ref[...], m[:, :MLP2], preferred_element_type=f32)      # (N, 32)
    t1 = jnp.dot(pool_t_ref[...], m[:, MLP2:], preferred_element_type=f32)      # (N, 32)
    x2 = jnp.maximum(jnp.concatenate([h1, t1], axis=-1)
                     + bias[0:1, :2 * MLP2], 0.0)                                # (N, 64)

    # ---- FFNN layer 2: block-diagonal [w2h, 0; 0, w2t] -> [heads | tails] in one matmul
    y = jnp.maximum(jnp.dot(x2, w2_ref[...], preferred_element_type=f32)
                    + bias[1:2, :2 * MLP4], 0.0)                                 # (N, 32)
    heads = y[:, :MLP4]                                                          # (N, 16)
    tails = y[:, MLP4:]                                                          # (N, 16)

    # ---- BiaffineAttention:
    #   bilinear_k = sum((heads @ bil[k]) * tails)  via stacked weight + selector matmul
    #   linear     = cat(heads, tails) @ W_lin + b  folded into the classifier slab
    z = jnp.dot(heads, bil_ref[...], preferred_element_type=f32)                 # (N, 32)
    zt = z * jnp.concatenate([tails, tails], axis=-1)                            # (N, 32)

    cls = cls_ref[...]                                                            # (64, 128)
    out_ref[...] = (jnp.dot(zt, cls[:2 * MLP4, :], preferred_element_type=f32)
                    + jnp.dot(y, cls[2 * MLP4:, :], preferred_element_type=f32)
                    + bias[2:3, :])                                               # (N, 128)


def re_logits_pallas(pool_h, pool_t, hidden_flat, packed):
    n = pool_h.shape[0]
    # Single invocation: no grid, every (small) operand is one whole-array VMEM block.
    return pl.pallas_call(
        _re_decoder_kernel,
        out_shape=jax.ShapeDtypeStruct((n, OUT_PAD), jnp.float32),
    )(pool_h, pool_t, hidden_flat, packed['emb_pad'], packed['w1'],
      packed['w2'], packed['bil'], packed['cls'], packed['bias'])


def _logits_and_loss(pool_h, pool_t, hidden_states, rel_labels, valid, packed):
    B, S, H = hidden_states.shape
    hidden_flat = hidden_states.reshape(B * S, H)
    out = re_logits_pallas(pool_h, pool_t, hidden_flat, packed)        # (B*R_pad, 128)
    r_pad = pool_h.shape[0] // B
    logits = out[:, :2].reshape(B, r_pad, 2)
    # CrossEntropyLoss (mean per doc over valid relations), summed over batch
    logz = jax.nn.logsumexp(logits, axis=-1)
    picked = jnp.take_along_axis(logits, rel_labels[..., None], axis=-1)[..., 0]
    per = (logz - picked) * valid
    loss = jnp.sum(jnp.sum(per, axis=-1) / jnp.sum(valid, axis=-1))
    return loss, logits


_logits_and_loss_jit = jax.jit(_logits_and_loss)


# =====================  host-side glue (matches REDecoder python logic)  =====================
def build_seq(relations, entities, b, key):
    labels = entities[b][key]
    n = len(labels)
    all_possible = set(
        (i, j) for i in range(n) for j in range(n)
        if labels[i] == 1 and (labels[j] == 2 or labels[j] == 4)
        and (j - i <= DEL_END) and (j - i >= DEL_BEGIN))
    if len(all_possible) == 0:
        all_possible = {(0, 1)}
    positive = set(zip(relations[b]['head'], relations[b]['tail']))
    if not positive.issubset(all_possible):
        print('wrong, loss relation')
    # eval mode: no union of positives into all_possible
    negative = all_possible - positive
    positive = set(i for i in positive if i in all_possible)
    reordered = sorted(positive) + sorted(negative)
    return {'head': [i[0] for i in reordered],
            'tail': [i[1] for i in reordered],
            'label': [1] * len(positive) + [0] * (len(reordered) - len(positive))}


def build_relation(relations, entities):
    new_relations = []
    for b in range(len(relations)):
        if len(entities[b]['start']) <= 2:
            entities[b] = {'end': [1, 1], 'label': [0, 0], 'start': [0, 0],
                           'group_id': [0, 0], 'index_id': [0, 0],
                           'column_id': [0, 0], 'row_id': [0, 0]}
        key = 'pred_label' if 'pred_label' in entities[b] else 'label'
        new_relations.append(build_seq(relations, entities, b, key))
    return new_relations, entities


def _assemble_inputs(relations, entities, B, S, R_pad):
    """Block-diagonal pooling + one-hot label columns, flattened over the batch."""
    GR = B * S + EMB_PAD
    N = B * R_pad
    pool_h = np.zeros((N, GR), np.float32)
    pool_t = np.zeros((N, GR), np.float32)
    rel_labels = np.zeros((B, R_pad), np.int32)
    valid = np.zeros((B, R_pad), np.float32)
    for b in range(B):
        nr = len(relations[b]['head'])
        for r in range(R_pad):
            rr = r if r < nr else 0            # padded rows replicate relation 0 (masked in loss)
            row = b * R_pad + r
            for pool, key in ((pool_h, 'head'), (pool_t, 'tail')):
                e = relations[b][key][rr]
                st = max(0, min(entities[b]['start'][e], S - 1))
                en = max(st + 1, min(entities[b]['end'][e], S))   # guard zero-length span
                pool[row, b * S + st: b * S + en] = 1.0 / float(en - st)
                lab = min(max(entities[b]['label'][e], 0), N_LABELS - 1)
                pool[row, B * S + lab] = 1.0                      # one-hot -> label embedding row
        rel_labels[b, :nr] = relations[b]['label']
        valid[b, :nr] = 1.0
    return pool_h, pool_t, rel_labels, valid


def get_predicted_relations(logits_b, relations_b, entities_b, n_valid):
    preds = []
    arg = np.asarray(logits_b).argmax(-1)
    for i in range(n_valid):
        if arg[i] != 1:
            continue
        rel = {}
        rel['head_id'] = relations_b['head'][i]
        rel['head'] = (entities_b['start'][rel['head_id']], entities_b['end'][rel['head_id']])
        rel['head_type'] = entities_b['label'][rel['head_id']]
        rel['tail_id'] = relations_b['tail'][i]
        rel['tail'] = (entities_b['start'][rel['tail_id']], entities_b['end'][rel['tail_id']])
        rel['tail_type'] = entities_b['label'][rel['tail_id']]
        rel['type'] = 1
        preds.append(rel)
    return preds


def re_decoder_forward(hidden_states, entities, relations, packed):
    B, S, H = hidden_states.shape
    relations, entities = build_relation(relations, entities)

    R_list = [len(relations[b]['head']) for b in range(B)]
    R_pad = max(8, -(-max(R_list) // 8) * 8)   # pad relation count to a sublane multiple

    pool_h, pool_t, rel_labels, valid = _assemble_inputs(relations, entities, B, S, R_pad)

    # TODO(synk): original code calls re_embedding with a broken arity; the intended
    # label-embedding-only path (use_special=False, epoch=None, no logits) is what is
    # implemented here (folded into the kernel via one-hot pooling columns).
    loss, logits = _logits_and_loss_jit(
        jnp.asarray(pool_h), jnp.asarray(pool_t), hidden_states,
        jnp.asarray(rel_labels), jnp.asarray(valid), packed)

    logits_np = np.asarray(logits)
    all_pred_relations = [
        get_predicted_relations(logits_np[b], relations[b], entities[b], R_list[b])
        for b in range(B)]
    return loss, all_pred_relations, logits


# =====================  deterministic parameter init + packing  =====================
def init_params(key):
    ks = jax.random.split(key, 16)

    def uni(k, shape, fan_in):
        bound = 1.0 / np.sqrt(fan_in)
        return jax.random.uniform(k, shape, jnp.float32, -bound, bound)

    return {
        'label_emb': jax.random.normal(ks[0], (N_LABELS, HIDDEN), jnp.float32),
        # ffnn_head: Linear(2H->H) [split entity|label], ReLU, Linear(H->H/2), ReLU
        'w1he': uni(ks[1], (HIDDEN, MLP2), MLP_DIM),
        'w1hl': uni(ks[2], (HIDDEN, MLP2), MLP_DIM),
        'b1h':  uni(ks[3], (1, MLP2), MLP_DIM),
        'w2h':  uni(ks[4], (MLP2, MLP4), MLP2),
        'b2h':  uni(ks[5], (1, MLP4), MLP2),
        # ffnn_tail
        'w1te': uni(ks[6], (HIDDEN, MLP2), MLP_DIM),
        'w1tl': uni(ks[7], (HIDDEN, MLP2), MLP_DIM),
        'b1t':  uni(ks[8], (1, MLP2), MLP_DIM),
        'w2t':  uni(ks[9], (MLP2, MLP4), MLP2),
        'b2t':  uni(ks[10], (1, MLP4), MLP2),
        # BiaffineAttention(in=MLP4, out=2)
        'bil':  uni(ks[11], (2, MLP4, MLP4), MLP4),
        'wlh':  uni(ks[12], (MLP4, 2), 2 * MLP4),
        'wlt':  uni(ks[13], (MLP4, 2), 2 * MLP4),
        'bl':   uni(ks[14], (1, 2), 2 * MLP4),
    }


def pack_params(params):
    """Pack the 15 parameter tensors into 6 lane-dense slabs (done once, host-side)."""
    p = {k: np.asarray(v) for k, v in params.items()}

    emb_pad = np.zeros((EMB_PAD, HIDDEN), np.float32)
    emb_pad[:N_LABELS] = p['label_emb']

    w1 = np.zeros((2 * HIDDEN, 2 * MLP2), np.float32)      # [[W1he|W1te],[W1hl|W1tl]]
    w1[:HIDDEN, :MLP2] = p['w1he']; w1[:HIDDEN, MLP2:] = p['w1te']
    w1[HIDDEN:, :MLP2] = p['w1hl']; w1[HIDDEN:, MLP2:] = p['w1tl']

    w2 = np.zeros((2 * MLP2, 2 * MLP4), np.float32)        # blockdiag(w2h, w2t)
    w2[:MLP2, :MLP4] = p['w2h']; w2[MLP2:, MLP4:] = p['w2t']

    bil = np.concatenate([p['bil'][0], p['bil'][1]], axis=-1).astype(np.float32)  # (16, 32)

    cls = np.zeros((4 * MLP4, OUT_PAD), np.float32)
    cls[:MLP4, 0] = 1.0                  # selector: sum(zt[:, :16])  -> logit 0
    cls[MLP4:2 * MLP4, 1] = 1.0          # selector: sum(zt[:, 16:32])-> logit 1
    cls[2 * MLP4:3 * MLP4, :2] = p['wlh']
    cls[3 * MLP4:, :2] = p['wlt']

    bias = np.zeros((3, OUT_PAD), np.float32)
    bias[0, :MLP2] = p['b1h'][0]; bias[0, MLP2:2 * MLP2] = p['b1t'][0]
    bias[1, :MLP4] = p['b2h'][0]; bias[1, MLP4:2 * MLP4] = p['b2t'][0]
    bias[2, :2] = p['bl'][0]

    return {'emb_pad': jnp.asarray(emb_pad), 'w1': jnp.asarray(w1),
            'w2': jnp.asarray(w2), 'bil': jnp.asarray(bil),
            'cls': jnp.asarray(cls), 'bias': jnp.asarray(bias)}


if __name__ == "__main__":
    key = jax.random.PRNGKey(0)
    k_hid, k_par = jax.random.split(key)

    hidden_states = jax.random.normal(k_hid, (BATCH, SEQ, HIDDEN), jnp.float32)

    entities = []
    for _ in range(BATCH):
        entities.append({
            'start':     [0, 3, 6, 9, 12, 14],
            'end':       [3, 6, 9, 12, 14, 16],
            'label':     [1, 2, 1, 2, 1, 2],
            'row_id':    [0, 0, 0, 0, 0, 0],
            'column_id': [0, 0, 0, 0, 0, 0],
            'group_id':  [0, 0, 0, 0, 0, 0],
            'index_id':  [0, 0, 0, 0, 0, 0],
        })
    relations = [
        {'head': [0, 2], 'tail': [1, 3]},
        {'head': [0],    'tail': [5]},
    ]
    bbox = None  # use_angle = False -> unused

    params = init_params(k_par)
    packed = pack_params(params)

    loss, all_pred_relations, logits = re_decoder_forward(hidden_states, entities, relations, packed)
    jax.block_until_ready(loss)
    jax.block_until_ready(logits)
    assert not bool(jnp.isnan(loss)), "wrong! loss"
    print("KERNEL_OK")
</pallas_src>

<mosaic_0001>
module attributes {stable_mosaic.version = 11 : i64} {
  func.func @_re_decoder_kernel(%arg0: memref<16x40xf32, #tpu.memory_space<vmem>>, %arg1: memref<16x40xf32, #tpu.memory_space<vmem>>, %arg2: memref<32x32xf32, #tpu.memory_space<vmem>>, %arg3: memref<8x32xf32, #tpu.memory_space<vmem>>, %arg4: memref<64x64xf32, #tpu.memory_space<vmem>>, %arg5: memref<64x32xf32, #tpu.memory_space<vmem>>, %arg6: memref<16x32xf32, #tpu.memory_space<vmem>>, %arg7: memref<64x128xf32, #tpu.memory_space<vmem>>, %arg8: memref<3x128xf32, #tpu.memory_space<vmem>>, %arg9: memref<16x128xf32, #tpu.memory_space<vmem>>) attributes {dimension_semantics = [], scalar_prefetch = 0 : i64, scratch_operands = 0 : i64, tpu.core_type = #tpu.core_type<tc>} {
    %c0 = arith.constant 0 : index
    %c0_0 = arith.constant 0 : index
    %0 = vector.load %arg4[%c0, %c0_0] : memref<64x64xf32, #tpu.memory_space<vmem>>, vector<64x64xf32>
    %c0_1 = arith.constant 0 : index
    %c0_2 = arith.constant 0 : index
    %1 = vector.load %arg8[%c0_1, %c0_2] : memref<3x128xf32, #tpu.memory_space<vmem>>, vector<3x128xf32>
    %c0_3 = arith.constant 0 : index
    %c0_4 = arith.constant 0 : index
    %2 = vector.load %arg2[%c0_3, %c0_4] : memref<32x32xf32, #tpu.memory_space<vmem>>, vector<32x32xf32>
    %3 = vector.extract_strided_slice %0 {offsets = [0, 0], sizes = [32, 64], strides = [1, 1]} : vector<64x64xf32> to vector<32x64xf32>
    %cst = arith.constant dense<0.000000e+00> : vector<32x64xf32>
    %4 = tpu.matmul %2, %3, %cst {dimension_numbers = #tpu.dot_dimension_numbers<[1], [0], [0], [1], [0, 0, 1, 1], [], []>} : vector<32x32xf32>, vector<32x64xf32>, vector<32x64xf32> -> vector<32x64xf32>
    %c0_5 = arith.constant 0 : index
    %c0_6 = arith.constant 0 : index
    %5 = vector.load %arg3[%c0_5, %c0_6] : memref<8x32xf32, #tpu.memory_space<vmem>>, vector<8x32xf32>
    %6 = vector.extract_strided_slice %0 {offsets = [32, 0], sizes = [32, 64], strides = [1, 1]} : vector<64x64xf32> to vector<32x64xf32>
    %cst_7 = arith.constant dense<0.000000e+00> : vector<8x64xf32>
    %7 = tpu.matmul %5, %6, %cst_7 {dimension_numbers = #tpu.dot_dimension_numbers<[1], [0], [0], [1], [0, 0, 1, 1], [], []>} : vector<8x32xf32>, vector<32x64xf32>, vector<8x64xf32> -> vector<8x64xf32>
    %8 = tpu.concatenate %4, %7 in 0 : vector<32x64xf32>, vector<8x64xf32> -> vector<40x64xf32>
    %c0_8 = arith.constant 0 : index
    %c0_9 = arith.constant 0 : index
    %9 = vector.load %arg0[%c0_8, %c0_9] : memref<16x40xf32, #tpu.memory_space<vmem>>, vector<16x40xf32>
    %10 = vector.extract_strided_slice %8 {offsets = [0, 0], sizes = [40, 32], strides = [1, 1]} : vector<40x64xf32> to vector<40x32xf32>
    %cst_10 = arith.constant dense<0.000000e+00> : vector<16x32xf32>
    %11 = tpu.matmul %9, %10, %cst_10 {dimension_numbers = #tpu.dot_dimension_numbers<[1], [0], [0], [1], [0, 0, 1, 1], [], []>} : vector<16x40xf32>, vector<40x32xf32>, vector<16x32xf32> -> vector<16x32xf32>
    %c0_11 = arith.constant 0 : index
    %c0_12 = arith.constant 0 : index
    %12 = vector.load %arg1[%c0_11, %c0_12] : memref<16x40xf32, #tpu.memory_space<vmem>>, vector<16x40xf32>
    %13 = vector.extract_strided_slice %8 {offsets = [0, 32], sizes = [40, 32], strides = [1, 1]} : vector<40x64xf32> to vector<40x32xf32>
    %cst_13 = arith.constant dense<0.000000e+00> : vector<16x32xf32>
    %14 = tpu.matmul %12, %13, %cst_13 {dimension_numbers = #tpu.dot_dimension_numbers<[1], [0], [0], [1], [0, 0, 1, 1], [], []>} : vector<16x40xf32>, vector<40x32xf32>, vector<16x32xf32> -> vector<16x32xf32>
    %15 = tpu.concatenate %11, %14 in 1 : vector<16x32xf32>, vector<16x32xf32> -> vector<16x64xf32>
    %16 = vector.extract_strided_slice %1 {offsets = [0, 0], sizes = [1, 64], strides = [1, 1]} : vector<3x128xf32> to vector<1x64xf32>
    %17 = vector.broadcast %16 : vector<1x64xf32> to vector<16x64xf32>
    %18 = arith.addf %15, %17 : vector<16x64xf32>
    %cst_14 = arith.constant 0.000000e+00 : f32
    %19 = vector.broadcast %cst_14 : f32 to vector<16x64xf32>
    %20 = arith.maximumf %18, %19 : vector<16x64xf32>
    %c0_15 = arith.constant 0 : index
    %c0_16 = arith.constant 0 : index
    %21 = vector.load %arg5[%c0_15, %c0_16] : memref<64x32xf32, #tpu.memory_space<vmem>>, vector<64x32xf32>
    %cst_17 = arith.constant dense<0.000000e+00> : vector<16x32xf32>
    %22 = tpu.matmul %20, %21, %cst_17 {dimension_numbers = #tpu.dot_dimension_numbers<[1], [0], [0], [1], [0, 0, 1, 1], [], []>} : vector<16x64xf32>, vector<64x32xf32>, vector<16x32xf32> -> vector<16x32xf32>
    %23 = vector.extract_strided_slice %1 {offsets = [1, 0], sizes = [1, 32], strides = [1, 1]} : vector<3x128xf32> to vector<1x32xf32>
    %24 = vector.broadcast %23 : vector<1x32xf32> to vector<16x32xf32>
    %25 = arith.addf %22, %24 : vector<16x32xf32>
    %cst_18 = arith.constant 0.000000e+00 : f32
    %26 = vector.broadcast %cst_18 : f32 to vector<16x32xf32>
    %27 = arith.maximumf %25, %26 : vector<16x32xf32>
    %28 = vector.extract_strided_slice %27 {offsets = [0, 0], sizes = [16, 16], strides = [1, 1]} : vector<16x32xf32> to vector<16x16xf32>
    %29 = vector.extract_strided_slice %27 {offsets = [0, 16], sizes = [16, 16], strides = [1, 1]} : vector<16x32xf32> to vector<16x16xf32>
    %c0_19 = arith.constant 0 : index
    %c0_20 = arith.constant 0 : index
    %30 = vector.load %arg6[%c0_19, %c0_20] : memref<16x32xf32, #tpu.memory_space<vmem>>, vector<16x32xf32>
    %cst_21 = arith.constant dense<0.000000e+00> : vector<16x32xf32>
    %31 = tpu.matmul %28, %30, %cst_21 {dimension_numbers = #tpu.dot_dimension_numbers<[1], [0], [0], [1], [0, 0, 1, 1], [], []>} : vector<16x16xf32>, vector<16x32xf32>, vector<16x32xf32> -> vector<16x32xf32>
    %32 = tpu.concatenate %29, %29 in 1 : vector<16x16xf32>, vector<16x16xf32> -> vector<16x32xf32>
    %33 = arith.mulf %31, %32 : vector<16x32xf32>
    %c0_22 = arith.constant 0 : index
    %c0_23 = arith.constant 0 : index
    %34 = vector.load %arg7[%c0_22, %c0_23] : memref<64x128xf32, #tpu.memory_space<vmem>>, vector<64x128xf32>
    %35 = vector.extract_strided_slice %34 {offsets = [0, 0], sizes = [32, 128], strides = [1, 1]} : vector<64x128xf32> to vector<32x128xf32>
    %cst_24 = arith.constant dense<0.000000e+00> : vector<16x128xf32>
    %36 = tpu.matmul %33, %35, %cst_24 {dimension_numbers = #tpu.dot_dimension_numbers<[1], [0], [0], [1], [0, 0, 1, 1], [], []>} : vector<16x32xf32>, vector<32x128xf32>, vector<16x128xf32> -> vector<16x128xf32>
    %37 = vector.extract_strided_slice %34 {offsets = [32, 0], sizes = [32, 128], strides = [1, 1]} : vector<64x128xf32> to vector<32x128xf32>
    %cst_25 = arith.constant dense<0.000000e+00> : vector<16x128xf32>
    %38 = tpu.matmul %27, %37, %cst_25 {dimension_numbers = #tpu.dot_dimension_numbers<[1], [0], [0], [1], [0, 0, 1, 1], [], []>} : vector<16x32xf32>, vector<32x128xf32>, vector<16x128xf32> -> vector<16x128xf32>
    %39 = arith.addf %36, %38 : vector<16x128xf32>
    %40 = vector.extract_strided_slice %1 {offsets = [2, 0], sizes = [1, 128], strides = [1, 1]} : vector<3x128xf32> to vector<1x128xf32>
    %41 = vector.broadcast %40 : vector<1x128xf32> to vector<16x128xf32>
    %42 = arith.addf %39, %41 : vector<16x128xf32>
    %c0_26 = arith.constant 0 : index
    %c0_27 = arith.constant 0 : index
    %43 = vector.load %arg9[%c0_26, %c0_27] : memref<16x128xf32, #tpu.memory_space<vmem>>, vector<16x128xf32>
    tpu.vector_store %arg9[%c0_26, %c0_27], %42 {strides = array<i32>} : memref<16x128xf32, #tpu.memory_space<vmem>>, vector<16x128xf32>,
    return
  }
}

</mosaic_0001>

<llo_original>
// kernel: _logits_and_loss.1
$region0: #{_logits_and_loss.1}
  #allocation0 [shape = 'u32[]', space=smem, size = 0x4, offset = 0x4, fixed_abs, tag = 'smem constant byte address 0x4 - core index']
  #allocation1 [shape = 'u32[144,128]{1,0:T(1,128)}', space=vmem, size = 0x12000, scoped, tag = 'internal scratch']
  %s0 = inlined_call_operand.hbm [shape: f32[16,40], index: 0, kind: input, shape index: {}]
  %s1 = inlined_call_operand.hbm [shape: f32[16,40], index: 1, kind: input, shape index: {}]
  %s2 = inlined_call_operand.vmem [shape: f32[32,32], index: 2, kind: input, shape index: {}]
  %s3 = inlined_call_operand.vmem [shape: f32[8,32], index: 3, kind: input, shape index: {}]
  %s4 = inlined_call_operand.vmem [shape: f32[64,64], index: 4, kind: input, shape index: {}]
  %s5 = inlined_call_operand.vmem [shape: f32[64,32], index: 5, kind: input, shape index: {}]
  %s6 = inlined_call_operand.hbm [shape: f32[16,32], index: 6, kind: input, shape index: {}]
  %s7 = inlined_call_operand.hbm [shape: f32[64,128], index: 7, kind: input, shape index: {}]
  %s8 = inlined_call_operand.vmem [shape: f32[3,128], index: 8, kind: input, shape index: {}]
  %s9 = inlined_call_operand.vmem [shape: f32[16,128], index: 9, kind: output, shape index: {}]
  %s10 = sld [smem:[#allocation0]]
  $region62: #{_logits_and_loss.1} parent=0
    _
  %s12 = ssub.s32 1, %s10
  %s13 = scalar_select 0, %s12, %s10
  $region1: #{_logits_and_loss.1} parent=0
    #allocation2 [shape = 'u8[8192]{0}', space=vmem, size = 0x2000, scoped, tag = 'input window, operand 0, single buffered']
    #allocation3 [shape = 's32[1]{0}', space=sflag, size = 0x4, scoped, tag = 'scoped memory for _logits_and_loss.1']
    #allocation4 [shape = 'u8[8192]{0}', space=vmem, size = 0x2000, scoped, tag = 'input window, operand 1, single buffered']
    #allocation5 [shape = 's32[1]{0}', space=sflag, size = 0x4, scoped, tag = 'scoped memory for _logits_and_loss.1']
    #allocation6 [shape = 'u8[8192]{0}', space=vmem, size = 0x2000, scoped, tag = 'input window, operand 6, single buffered']
    #allocation7 [shape = 'u8[32768]{0}', space=vmem, size = 0x8000, scoped, tag = 'input window, operand 7, single buffered']
    #allocation8 [shape = 's32[1]{0}', space=sflag, size = 0x4, scoped, tag = 'scoped memory for _logits_and_loss.1']
    %14 = vsyncpa [#allocation3], 0
    %15 = vsyncpa [#allocation5], 0
    %16 = vsyncpa [#allocation8], 0
    // Predicated region
    $region2: #{_logits_and_loss.1} parent=1 // pred_check
      _
    $region3: #{_logits_and_loss.1} parent=1 // pred_check_branch
      %18 = sbr.rel (0) target = $region5
    $region4: #{_logits_and_loss.1} parent=1 // pred_region
      %s20 = ssub.s32 256, 256
      %21 = vsyncadd [#allocation3], %s20
      %s22 = sshll.u32 [#allocation2], 4
      %s23 = int_to_ptr.vmem [resolvable:$true] %s22
      %28 = dma.hbm_to_vmem [thread:$0]  %s0, 256, %s23, [#allocation3], 128, 128, 8
    $region5: #{_logits_and_loss.1} parent=1 // pred_fallthru
      _
    // Predicated region
    $region6: #{_logits_and_loss.1} parent=1 // pred_check
      _
    $region7: #{_logits_and_loss.1} parent=1 // pred_check_branch
      %30 = sbr.rel (0) target = $region9
    $region8: #{_logits_and_loss.1} parent=1 // pred_region
      %s32 = ssub.s32 256, 256
      %33 = vsyncadd [#allocation5], %s32
      %s34 = sshll.u32 [#allocation4], 4
      %s35 = int_to_ptr.vmem [resolvable:$true] %s34
      %40 = dma.hbm_to_vmem [thread:$0]  %s1, 256, %s35, [#allocation5], 128, 128, 8
    $region9: #{_logits_and_loss.1} parent=1 // pred_fallthru
      _
    // Predicated region
    $region10: #{_logits_and_loss.1} parent=1 // pred_check
      _
    $region11: #{_logits_and_loss.1} parent=1 // pred_check_branch
      %42 = sbr.rel (0) target = $region13
    $region12: #{_logits_and_loss.1} parent=1 // pred_region
      _
    $region13: #{_logits_and_loss.1} parent=1 // pred_fallthru
      _
    // Predicated region
    $region14: #{_logits_and_loss.1} parent=1 // pred_check
      _
    $region15: #{_logits_and_loss.1} parent=1 // pred_check_branch
      %44 = sbr.rel (0) target = $region17
    $region16: #{_logits_and_loss.1} parent=1 // pred_region
      _
    $region17: #{_logits_and_loss.1} parent=1 // pred_fallthru
      _
    // Predicated region
    $region18: #{_logits_and_loss.1} parent=1 // pred_check
      _
    $region19: #{_logits_and_loss.1} parent=1 // pred_check_branch
      %46 = sbr.rel (0) target = $region21
    $region20: #{_logits_and_loss.1} parent=1 // pred_region
      _
    $region21: #{_logits_and_loss.1} parent=1 // pred_fallthru
      _
    // Predicated region
    $region22: #{_logits_and_loss.1} parent=1 // pred_check
      _
    $region23: #{_logits_and_loss.1} parent=1 // pred_check_branch
      %48 = sbr.rel (0) target = $region25
    $region24: #{_logits_and_loss.1} parent=1 // pred_region
      _
    $region25: #{_logits_and_loss.1} parent=1 // pred_fallthru
      _
    // Predicated region
    $region26: #{_logits_and_loss.1} parent=1 // pred_check
      _
    $region27: #{_logits_and_loss.1} parent=1 // pred_check_branch
      %50 = sbr.rel (0) target = $region29
    $region28: #{_logits_and_loss.1} parent=1 // pred_region
      %s52 = ssub.s32 256, 256
      %53 = vsyncadd [#allocation5], %s52
      %s54 = sshll.u32 [#allocation6], 4
      %s55 = int_to_ptr.vmem [resolvable:$true] %s54
      %60 = dma.hbm_to_vmem [thread:$0]  %s6, 256, %s55, [#allocation5], 128, 128, 8
    $region29: #{_logits_and_loss.1} parent=1 // pred_fallthru
      _
    // Predicated region
    $region30: #{_logits_and_loss.1} parent=1 // pred_check
      _
    $region31: #{_logits_and_loss.1} parent=1 // pred_check_branch
      %62 = sbr.rel (0) target = $region33
    $region32: #{_logits_and_loss.1} parent=1 // pred_region
      %s64 = ssub.s32 1024, 1024
      %65 = vsyncadd [#allocation8], %s64
      %s66 = sshll.u32 [#allocation7], 4
      %s67 = int_to_ptr.vmem [resolvable:$true] %s66
      %72 = dma.hbm_to_vmem [thread:$0]  %s7, 1024, %s67, [#allocation8], 128, 128, 8
    $region33: #{_logits_and_loss.1} parent=1 // pred_fallthru
      _
    // Predicated region
    $region34: #{_logits_and_loss.1} parent=1 // pred_check
      _
    $region35: #{_logits_and_loss.1} parent=1 // pred_check_branch
      %74 = sbr.rel (0) target = $region37
    $region36: #{_logits_and_loss.1} parent=1 // pred_region
      _
    $region37: #{_logits_and_loss.1} parent=1 // pred_fallthru
      _
    // Predicated region
    $region38: #{_logits_and_loss.1} parent=1 // pred_check
      _
    $region39: #{_logits_and_loss.1} parent=1 // pred_check_branch
      %76 = sbr.rel (0) target = $region41
    $region40: #{_logits_and_loss.1} parent=1 // pred_region
      %77 = dma.done [#allocation3], 256
    $region41: #{_logits_and_loss.1} parent=1 // pred_fallthru
      _
    // Predicated region
    $region42: #{_logits_and_loss.1} parent=1 // pred_check
      _
    $region43: #{_logits_and_loss.1} parent=1 // pred_check_branch
      %79 = sbr.rel (0) target = $region45
    $region44: #{_logits_and_loss.1} parent=1 // pred_region
      %80 = dma.done [#allocation5], 256
    $region45: #{_logits_and_loss.1} parent=1 // pred_fallthru
      _
    // Predicated region
    $region46: #{_logits_and_loss.1} parent=1 // pred_check
      _
    $region47: #{_logits_and_loss.1} parent=1 // pred_check_branch
      %82 = sbr.rel (0) target = $region49
    $region48: #{_logits_and_loss.1} parent=1 // pred_region
      %83 = dma.done [#allocation5], 256
    $region49: #{_logits_and_loss.1} parent=1 // pred_fallthru
      _
    // Predicated region
    $region50: #{_logits_and_loss.1} parent=1 // pred_check
      _
    $region51: #{_logits_and_loss.1} parent=1 // pred_check_branch
      %85 = sbr.rel (0) target = $region53
    $region52: #{_logits_and_loss.1} parent=1 // pred_region
      %86 = dma.done [#allocation8], 1024
    $region53: #{_logits_and_loss.1} parent=1 // pred_fallthru
      _
    %v87 = vld [vmem:[%s4] sm:$0xff]
    %v88 = vld [vmem:[%s4 + $0x8] sm:$0xff]
    %v89 = vld [vmem:[%s4 + $0x10] sm:$0xff]
    %v90 = vld [vmem:[%s4 + $0x18] sm:$0xff]
    %v91 = vld [vmem:[%s4 + $0x20] sm:$0xff]
    %v92 = vld [vmem:[%s4 + $0x28] sm:$0xff]
    %v93 = vld [vmem:[%s4 + $0x30] sm:$0xff]
    %v94 = vld [vmem:[%s4 + $0x38] sm:$0xff]
    %v95 = vld [vmem:[%s8] sm:$0x7]
    %v96 = vld [vmem:[%s2] sm:$0xff]
    %v97 = vld [vmem:[%s2 + $0x8] sm:$0xff]
    %v98 = vld [vmem:[%s2 + $0x10] sm:$0xff]
    %v99 = vld [vmem:[%s2 + $0x18] sm:$0xff]
    %vm100 = vcmask 261120
    %v102 = vsel %vm100, %v96, 0
    %v105 = vsel %vm100, %v97, 0
    %v108 = vsel %vm100, %v98, 0
    %v111 = vsel %vm100, %v99, 0
    %113 = vmatprep.subr.mxu0 0.0
    %114 = vmatpush1.msra.mxu0 0.0
    %115 = vmatprep.subr.mxu0 0.0
    %116 = vmatpush1.msra.mxu0 0.0
    %117 = vmatprep.subr.mxu0 0.0
    %118 = vmatpush1.msra.mxu0 0.0
    %119 = vmatprep.subr.mxu0 0.0
    %120 = vmatpush1.msra.mxu0 0.0
    %121 = vmatprep.subr.mxu0 0.0
    %122 = vmatpush1.msra.mxu0 0.0
    %123 = vmatprep.subr.mxu0 0.0
    %124 = vmatpush1.msra.mxu0 0.0
    %125 = vmatprep.subr.mxu0 0.0
    %126 = vmatpush1.msra.mxu0 0.0
    %127 = vmatprep.subr.mxu0 0.0
    %128 = vmatpush1.msra.mxu0 0.0
    %129 = vmatprep.subr.mxu0 0.0
    %130 = vmatpush1.msra.mxu0 0.0
    %131 = vmatprep.subr.mxu0 0.0
    %132 = vmatpush1.msra.mxu0 0.0
    %133 = vmatprep.subr.mxu0 0.0
    %134 = vmatpush1.msra.mxu0 0.0
    %135 = vmatprep.subr.mxu0 0.0
    %136 = vmatpush1.msra.mxu0 0.0
    %137 = vmatprep.subr.mxu0 0.0
    %138 = vmatpush1.msra.mxu0 %v90
    %139 = vmatprep.subr.mxu0 0.0
    %140 = vmatpush1.msra.mxu0 %v89
    %141 = vmatprep.subr.mxu0 0.0
    %142 = vmatpush1.msra.mxu0 %v88
    %143 = vmatprep.subr.mxu0 0.0
    %144 = vmatpush1.msra.mxu0 %v87
    %145 = vmatprep.subr.mxu0 0.0
    %146 = vmatpush2.msra.mxu0 0.0
    %147 = vmatprep.subr.mxu0 0.0
    %148 = vmatpush2.msra.mxu0 0.0
    %149 = vmatprep.subr.mxu0 0.0
    %150 = vmatpush2.msra.mxu0 0.0
    %151 = vmatprep.subr.mxu0 0.0
    %152 = vmatpush2.msra.mxu0 0.0
    %153 = vmatprep.subr.mxu0 0.0
    %154 = vmatpush2.msra.mxu0 0.0
    %155 = vmatprep.subr.mxu0 0.0
    %156 = vmatpush2.msra.mxu0 0.0
    %157 = vmatprep.subr.mxu0 0.0
    %158 = vmatpush2.msra.mxu0 0.0
    %159 = vmatprep.subr.mxu0 0.0
    %160 = vmatpush2.msra.mxu0 0.0
    %161 = vmatprep.subr.mxu0 0.0
    %162 = vmatpush2.msra.mxu0 0.0
    %163 = vmatprep.subr.mxu0 0.0
    %164 = vmatpush2.msra.mxu0 0.0
    %165 = vmatprep.subr.mxu0 0.0
    %166 = vmatpush2.msra.mxu0 0.0
    %167 = vmatprep.subr.mxu0 0.0
    %168 = vmatpush2.msra.mxu0 0.0
    %169 = vmatprep.subr.mxu0 0.0
    %170 = vmatpush2.msra.mxu0 0.0
    %171 = vmatprep.subr.mxu0 0.0
    %172 = vmatpush2.msra.mxu0 0.0
    %173 = vmatprep.subr.mxu0 0.0
    %174 = vmatpush2.msra.mxu0 0.0
    %175 = vmatprep.subr.mxu0 0.0
    %176 = vmatpush2.msra.mxu0 0.0
    %177 = vmatprep.mubr.f32.mxu0 0.0
    %178 = vmatmul.mubr.f32.gmra.mxu0 %v102
    %v179 = vpop.f32.mrf.mxu0
    %v180 = vadd.f32 0.0, %v179
    %v181 = vpop.f32.mrf.mxu0
    %182 = vmatprep.mubr.f32.mxu0 0.0
    %183 = vmatmul.mubr.f32.gmra.mxu0 %v105
    %v184 = vpop.f32.mrf.mxu0
    %v185 = vadd.f32 0.0, %v184
    %v186 = vpop.f32.mrf.mxu0
    %187 = vmatprep.mubr.f32.mxu0 0.0
    %188 = vmatmul.mubr.f32.gmra.mxu0 %v108
    %v189 = vpop.f32.mrf.mxu0
    %v190 = vadd.f32 0.0, %v189
    %v191 = vpop.f32.mrf.mxu0
    %192 = vmatprep.mubr.f32.mxu0 0.0
    %193 = vmatmul.mubr.f32.gmra.mxu0 %v111
    %v194 = vpop.f32.mrf.mxu0
    %v195 = vadd.f32 0.0, %v194
    %v196 = vpop.f32.mrf.mxu0
    %197 = vdwg.mxu0
    %v198 = vld [vmem:[%s3] sm:$0xff]
    %v200 = vsel %vm100, %v198, 0
    %202 = vmatprep.subr.mxu0 0.0
    %203 = vmatpush1.msra.mxu0 0.0
    %204 = vmatprep.subr.mxu0 0.0
    %205 = vmatpush1.msra.mxu0 0.0
    %206 = vmatprep.subr.mxu0 0.0
    %207 = vmatpush1.msra.mxu0 0.0
    %208 = vmatprep.subr.mxu0 0.0
    %209 = vmatpush1.msra.mxu0 0.0
    %210 = vmatprep.subr.mxu0 0.0
    %211 = vmatpush1.msra.mxu0 0.0
    %212 = vmatprep.subr.mxu0 0.0
    %213 = vmatpush1.msra.mxu0 0.0
    %214 = vmatprep.subr.mxu0 0.0
    %215 = vmatpush1.msra.mxu0 0.0
    %216 = vmatprep.subr.mxu0 0.0
    %217 = vmatpush1.msra.mxu0 0.0
    %218 = vmatprep.subr.mxu0 0.0
    %219 = vmatpush1.msra.mxu0 0.0
    %220 = vmatprep.subr.mxu0 0.0
    %221 = vmatpush1.msra.mxu0 0.0
    %222 = vmatprep.subr.mxu0 0.0
    %223 = vmatpush1.msra.mxu0 0.0
    %224 = vmatprep.subr.mxu0 0.0
    %225 = vmatpush1.msra.mxu0 0.0
    %226 = vmatprep.subr.mxu0 0.0
    %227 = vmatpush1.msra.mxu0 %v94
    %228 = vmatprep.subr.mxu0 0.0
    %229 = vmatpush1.msra.mxu0 %v93
    %230 = vmatprep.subr.mxu0 0.0
    %231 = vmatpush1.msra.mxu0 %v92
    %232 = vmatprep.subr.mxu0 0.0
    %233 = vmatpush1.msra.mxu0 %v91
    %234 = vmatprep.subr.mxu0 0.0
    %235 = vmatpush2.msra.mxu0 0.0
    %236 = vmatprep.subr.mxu0 0.0
    %237 = vmatpush2.msra.mxu0 0.0
    %238 = vmatprep.subr.mxu0 0.0
    %239 = vmatpush2.msra.mxu0 0.0
    %240 = vmatprep.subr.mxu0 0.0
    %241 = vmatpush2.msra.mxu0 0.0
    %242 = vmatprep.subr.mxu0 0.0
    %243 = vmatpush2.msra.mxu0 0.0
    %244 = vmatprep.subr.mxu0 0.0
    %245 = vmatpush2.msra.mxu0 0.0
    %246 = vmatprep.subr.mxu0 0.0
    %247 = vmatpush2.msra.mxu0 0.0
    %248 = vmatprep.subr.mxu0 0.0
    %249 = vmatpush2.msra.mxu0 0.0
    %250 = vmatprep.subr.mxu0 0.0
    %251 = vmatpush2.msra.mxu0 0.0
    %252 = vmatprep.subr.mxu0 0.0
    %253 = vmatpush2.msra.mxu0 0.0
    %254 = vmatprep.subr.mxu0 0.0
    %255 = vmatpush2.msra.mxu0 0.0
    %256 = vmatprep.subr.mxu0 0.0
    %257 = vmatpush2.msra.mxu0 0.0
    %258 = vmatprep.subr.mxu0 0.0
    %259 = vmatpush2.msra.mxu0 0.0
    %260 = vmatprep.subr.mxu0 0.0
    %261 = vmatpush2.msra.mxu0 0.0
    %262 = vmatprep.subr.mxu0 0.0
    %263 = vmatpush2.msra.mxu0 0.0
    %264 = vmatprep.subr.mxu0 0.0
    %265 = vmatpush2.msra.mxu0 0.0
    %266 = vmatprep.mubr.f32.mxu0 0.0
    %267 = vmatmul.mubr.f32.gmra.mxu0 %v200
    %v268 = vpop.f32.mrf.mxu0
    %v269 = vadd.f32 0.0, %v268
    %v270 = vpop.f32.mrf.mxu0
    %271 = vdwg.mxu0
    %v272 = vld [vmem:[#allocation2] sm:$0xff]
    %v273 = vld [vmem:[#allocation2 + $0x8] sm:$0xff]
    %vm274 = vcmask 326656
    %v276 = vsel %vm274, %v272, 0
    %v279 = vsel %vm274, %v273, 0
    %281 = vmatprep.subr.mxu0 0.0
    %282 = vmatpush1.msra.mxu0 0.0
    %283 = vmatprep.subr.mxu0 0.0
    %284 = vmatpush1.msra.mxu0 0.0
    %285 = vmatprep.subr.mxu0 0.0
    %286 = vmatpush1.msra.mxu0 0.0
    %287 = vmatprep.subr.mxu0 0.0
    %288 = vmatpush1.msra.mxu0 0.0
    %289 = vmatprep.subr.mxu0 0.0
    %290 = vmatpush1.msra.mxu0 0.0
    %291 = vmatprep.subr.mxu0 0.0
    %292 = vmatpush1.msra.mxu0 0.0
    %293 = vmatprep.subr.mxu0 0.0
    %294 = vmatpush1.msra.mxu0 0.0
    %295 = vmatprep.subr.mxu0 0.0
    %296 = vmatpush1.msra.mxu0 0.0
    %297 = vmatprep.subr.mxu0 0.0
    %298 = vmatpush1.msra.mxu0 0.0
    %299 = vmatprep.subr.mxu0 0.0
    %300 = vmatpush1.msra.mxu0 0.0
    %301 = vmatprep.subr.mxu0 0.0
    %302 = vmatpush1.msra.mxu0 0.0
    %303 = vmatprep.subr.mxu0 0.0
    %304 = vmatpush1.msra.mxu0 %v269
    %305 = vmatprep.subr.mxu0 0.0
    %306 = vmatpush1.msra.mxu0 %v195
    %307 = vmatprep.subr.mxu0 0.0
    %308 = vmatpush1.msra.mxu0 %v190
    %309 = vmatprep.subr.mxu0 0.0
    %310 = vmatpush1.msra.mxu0 %v185
    %311 = vmatprep.subr.mxu0 0.0
    %312 = vmatpush1.msra.mxu0 %v180
    %313 = vmatprep.subr.mxu0 0.0
    %314 = vmatpush2.msra.mxu0 0.0
    %315 = vmatprep.subr.mxu0 0.0
    %316 = vmatpush2.msra.mxu0 0.0
    %317 = vmatprep.subr.mxu0 0.0
    %318 = vmatpush2.msra.mxu0 0.0
    %319 = vmatprep.subr.mxu0 0.0
    %320 = vmatpush2.msra.mxu0 0.0
    %321 = vmatprep.subr.mxu0 0.0
    %322 = vmatpush2.msra.mxu0 0.0
    %323 = vmatprep.subr.mxu0 0.0
    %324 = vmatpush2.msra.mxu0 0.0
    %325 = vmatprep.subr.mxu0 0.0
    %326 = vmatpush2.msra.mxu0 0.0
    %327 = vmatprep.subr.mxu0 0.0
    %328 = vmatpush2.msra.mxu0 0.0
    %329 = vmatprep.subr.mxu0 0.0
    %330 = vmatpush2.msra.mxu0 0.0
    %331 = vmatprep.subr.mxu0 0.0
    %332 = vmatpush2.msra.mxu0 0.0
    %333 = vmatprep.subr.mxu0 0.0
    %334 = vmatpush2.msra.mxu0 0.0
    %335 = vmatprep.subr.mxu0 0.0
    %336 = vmatpush2.msra.mxu0 0.0
    %337 = vmatprep.subr.mxu0 0.0
    %338 = vmatpush2.msra.mxu0 0.0
    %339 = vmatprep.subr.mxu0 0.0
    %340 = vmatpush2.msra.mxu0 0.0
    %341 = vmatprep.subr.mxu0 0.0
    %342 = vmatpush2.msra.mxu0 0.0
    %343 = vmatprep.subr.mxu0 0.0
    %344 = vmatpush2.msra.mxu0 0.0
    %345 = vmatprep.mubr.f32.mxu0 0.0
    %346 = vmatmul.mubr.f32.gmra.mxu0 %v276
    %v347 = vpop.f32.mrf.mxu0
    %v348 = vadd.f32 0.0, %v347
    %v349 = vpop.f32.mrf.mxu0
    %350 = vmatprep.mubr.f32.mxu0 0.0
    %351 = vmatmul.mubr.f32.gmra.mxu0 %v279
    %v352 = vpop.f32.mrf.mxu0
    %v353 = vadd.f32 0.0, %v352
    %v354 = vpop.f32.mrf.mxu0
    %355 = vdwg.mxu0
    %v356 = vld [vmem:[#allocation4] sm:$0xff]
    %v357 = vld [vmem:[#allocation4 + $0x8] sm:$0xff]
    %363 = vrot.lane.b32.xlu0 %v180, 96
    %v364 = vpop.permute.xlu0 %363
    %365 = vrot.lane.b32.xlu0 %v185, 96
    %v366 = vpop.permute.xlu0 %365
    %367 = vrot.lane.b32.xlu0 %v190, 96
    %v368 = vpop.permute.xlu0 %367
    %369 = vrot.lane.b32.xlu0 %v195, 96
    %v370 = vpop.permute.xlu0 %369
    %371 = vrot.lane.b32.xlu0 %v269, 96
    %v372 = vpop.permute.xlu0 %371
    %v379 = vsel %vm274, %v356, 0
    %v382 = vsel %vm274, %v357, 0
    %384 = vmatprep.subr.mxu0 0.0
    %385 = vmatpush1.msra.mxu0 0.0
    %386 = vmatprep.subr.mxu0 0.0
    %387 = vmatpush1.msra.mxu0 0.0
    %388 = vmatprep.subr.mxu0 0.0
    %389 = vmatpush1.msra.mxu0 0.0
    %390 = vmatprep.subr.mxu0 0.0
    %391 = vmatpush1.msra.mxu0 0.0
    %392 = vmatprep.subr.mxu0 0.0
    %393 = vmatpush1.msra.mxu0 0.0
    %394 = vmatprep.subr.mxu0 0.0
    %395 = vmatpush1.msra.mxu0 0.0
    %396 = vmatprep.subr.mxu0 0.0
    %397 = vmatpush1.msra.mxu0 0.0
    %398 = vmatprep.subr.mxu0 0.0
    %399 = vmatpush1.msra.mxu0 0.0
    %400 = vmatprep.subr.mxu0 0.0
    %401 = vmatpush1.msra.mxu0 0.0
    %402 = vmatprep.subr.mxu0 0.0
    %403 = vmatpush1.msra.mxu0 0.0
    %404 = vmatprep.subr.mxu0 0.0
    %405 = vmatpush1.msra.mxu0 0.0
    %406 = vmatprep.subr.mxu0 0.0
    %407 = vmatpush1.msra.mxu0 %v372
    %408 = vmatprep.subr.mxu0 0.0
    %409 = vmatpush1.msra.mxu0 %v370
    %410 = vmatprep.subr.mxu0 0.0
    %411 = vmatpush1.msra.mxu0 %v368
    %412 = vmatprep.subr.mxu0 0.0
    %413 = vmatpush1.msra.mxu0 %v366
    %414 = vmatprep.subr.mxu0 0.0
    %415 = vmatpush1.msra.mxu0 %v364
    %416 = vmatprep.subr.mxu0 0.0
    %417 = vmatpush2.msra.mxu0 0.0
    %418 = vmatprep.subr.mxu0 0.0
    %419 = vmatpush2.msra.mxu0 0.0
    %420 = vmatprep.subr.mxu0 0.0
    %421 = vmatpush2.msra.mxu0 0.0
    %422 = vmatprep.subr.mxu0 0.0
    %423 = vmatpush2.msra.mxu0 0.0
    %424 = vmatprep.subr.mxu0 0.0
    %425 = vmatpush2.msra.mxu0 0.0
    %426 = vmatprep.subr.mxu0 0.0
    %427 = vmatpush2.msra.mxu0 0.0
    %428 = vmatprep.subr.mxu0 0.0
    %429 = vmatpush2.msra.mxu0 0.0
    %430 = vmatprep.subr.mxu0 0.0
    %431 = vmatpush2.msra.mxu0 0.0
    %432 = vmatprep.subr.mxu0 0.0
    %433 = vmatpush2.msra.mxu0 0.0
    %434 = vmatprep.subr.mxu0 0.0
    %435 = vmatpush2.msra.mxu0 0.0
    %436 = vmatprep.subr.mxu0 0.0
    %437 = vmatpush2.msra.mxu0 0.0
    %438 = vmatprep.subr.mxu0 0.0
    %439 = vmatpush2.msra.mxu0 0.0
    %440 = vmatprep.subr.mxu0 0.0
    %441 = vmatpush2.msra.mxu0 0.0
    %442 = vmatprep.subr.mxu0 0.0
    %443 = vmatpush2.msra.mxu0 0.0
    %444 = vmatprep.subr.mxu0 0.0
    %445 = vmatpush2.msra.mxu0 0.0
    %446 = vmatprep.subr.mxu0 0.0
    %447 = vmatpush2.msra.mxu0 0.0
    %448 = vmatprep.mubr.f32.mxu0 0.0
    %449 = vmatmul.mubr.f32.gmra.mxu0 %v379
    %v450 = vpop.f32.mrf.mxu0
    %v451 = vadd.f32 0.0, %v450
    %v452 = vpop.f32.mrf.mxu0
    %453 = vmatprep.mubr.f32.mxu0 0.0
    %454 = vmatmul.mubr.f32.gmra.mxu0 %v382
    %v455 = vpop.f32.mrf.mxu0
    %v456 = vadd.f32 0.0, %v455
    %v457 = vpop.f32.mrf.mxu0
    %458 = vdwg.mxu0
    %461 = vrot.lane.b32.xlu0 %v451, 32
    %v462 = vpop.permute.xlu0 %461
    %463 = vrot.lane.b32.xlu0 %v456, 32
    %v464 = vpop.permute.xlu0 %463
    %v467 = vsel %vm100, %v348, %v462
    %v468 = vsel %vm100, %v353, %v464
    %v469 = vlaneseq
    %v470 = vshrl.u32 %v469, 7
    %v471 = vsub.s32 0, %v470
    %v472 = vrot.slane %v95, %v471
    %v473 = vadd.f32 %v467, %v472
    %v474 = vadd.f32 %v468, %v472
    %v475 = vmax.f32 %v473, 0.0
    %v476 = vmax.f32 %v474, 0.0
    %v477 = vld [vmem:[%s5] sm:$0xff]
    %v478 = vld [vmem:[%s5 + $0x8] sm:$0xff]
    %v479 = vld [vmem:[%s5 + $0x10] sm:$0xff]
    %v480 = vld [vmem:[%s5 + $0x18] sm:$0xff]
    %v481 = vld [vmem:[%s5 + $0x20] sm:$0xff]
    %v482 = vld [vmem:[%s5 + $0x28] sm:$0xff]
    %v483 = vld [vmem:[%s5 + $0x30] sm:$0xff]
    %v484 = vld [vmem:[%s5 + $0x38] sm:$0xff]
    %v485 = vlaneseq
    %v486 = vshrl.u32 %v485, 7
    %v487 = vsub.s32 1, %v486
    %v488 = vrot.slane %v95, %v487
    %vm489 = vcmask 523264
    %v491 = vsel %vm489, %v475, 0
    %v494 = vsel %vm489, %v476, 0
    %496 = vmatprep.subr.mxu0 0.0
    %497 = vmatpush1.msra.mxu0 0.0
    %498 = vmatprep.subr.mxu0 0.0
    %499 = vmatpush1.msra.mxu0 0.0
    %500 = vmatprep.subr.mxu0 0.0
    %501 = vmatpush1.msra.mxu0 0.0
    %502 = vmatprep.subr.mxu0 0.0
    %503 = vmatpush1.msra.mxu0 0.0
    %504 = vmatprep.subr.mxu0 0.0
    %505 = vmatpush1.msra.mxu0 0.0
    %506 = vmatprep.subr.mxu0 0.0
    %507 = vmatpush1.msra.mxu0 0.0
    %508 = vmatprep.subr.mxu0 0.0
    %509 = vmatpush1.msra.mxu0 0.0
    %510 = vmatprep.subr.mxu0 0.0
    %511 = vmatpush1.msra.mxu0 0.0
    %512 = vmatprep.subr.mxu0 0.0
    %513 = vmatpush1.msra.mxu0 %v484
    %514 = vmatprep.subr.mxu0 0.0
    %515 = vmatpush1.msra.mxu0 %v483
    %516 = vmatprep.subr.mxu0 0.0
    %517 = vmatpush1.msra.mxu0 %v482
    %518 = vmatprep.subr.mxu0 0.0
    %519 = vmatpush1.msra.mxu0 %v481
    %520 = vmatprep.subr.mxu0 0.0
    %521 = vmatpush1.msra.mxu0 %v480
    %522 = vmatprep.subr.mxu0 0.0
    %523 = vmatpush1.msra.mxu0 %v479
    %524 = vmatprep.subr.mxu0 0.0
    %525 = vmatpush1.msra.mxu0 %v478
    %526 = vmatprep.subr.mxu0 0.0
    %527 = vmatpush1.msra.mxu0 %v477
    %528 = vmatprep.subr.mxu0 0.0
    %529 = vmatpush2.msra.mxu0 0.0
    %530 = vmatprep.subr.mxu0 0.0
    %531 = vmatpush2.msra.mxu0 0.0
    %532 = vmatprep.subr.mxu0 0.0
    %533 = vmatpush2.msra.mxu0 0.0
    %534 = vmatprep.subr.mxu0 0.0
    %535 = vmatpush2.msra.mxu0 0.0
    %536 = vmatprep.subr.mxu0 0.0
    %537 = vmatpush2.msra.mxu0 0.0
    %538 = vmatprep.subr.mxu0 0.0
    %539 = vmatpush2.msra.mxu0 0.0
    %540 = vmatprep.subr.mxu0 0.0
    %541 = vmatpush2.msra.mxu0 0.0
    %542 = vmatprep.subr.mxu0 0.0
    %543 = vmatpush2.msra.mxu0 0.0
    %544 = vmatprep.subr.mxu0 0.0
    %545 = vmatpush2.msra.mxu0 0.0
    %546 = vmatprep.subr.mxu0 0.0
    %547 = vmatpush2.msra.mxu0 0.0
    %548 = vmatprep.subr.mxu0 0.0
    %549 = vmatpush2.msra.mxu0 0.0
    %550 = vmatprep.subr.mxu0 0.0
    %551 = vmatpush2.msra.mxu0 0.0
    %552 = vmatprep.subr.mxu0 0.0
    %553 = vmatpush2.msra.mxu0 0.0
    %554 = vmatprep.subr.mxu0 0.0
    %555 = vmatpush2.msra.mxu0 0.0
    %556 = vmatprep.subr.mxu0 0.0
    %557 = vmatpush2.msra.mxu0 0.0
    %558 = vmatprep.subr.mxu0 0.0
    %559 = vmatpush2.msra.mxu0 0.0
    %560 = vmatprep.mubr.f32.mxu0 0.0
    %561 = vmatmul.mubr.f32.gmra.mxu0 %v491
    %v562 = vpop.f32.mrf.mxu0
    %v563 = vadd.f32 %v488, %v562
    %v564 = vpop.f32.mrf.mxu0
    %565 = vmatprep.mubr.f32.mxu0 0.0
    %566 = vmatmul.mubr.f32.gmra.mxu0 %v494
    %v567 = vpop.f32.mrf.mxu0
    %v568 = vadd.f32 %v488, %v567
    %v569 = vpop.f32.mrf.mxu0
    %570 = vdwg.mxu0
    %v571 = vmax.f32 %v563, 0.0
    %v572 = vmax.f32 %v568, 0.0
    %v573 = vld [vmem:[#allocation6] sm:$0xff]
    %v574 = vld [vmem:[#allocation6 + $0x8] sm:$0xff]
    %vm575 = vcmask 130048
    %v577 = vsel %vm575, %v571, 0
    %v580 = vsel %vm575, %v572, 0
    %582 = vmatprep.subr.mxu0 0.0
    %583 = vmatpush1.msra.mxu0 0.0
    %584 = vmatprep.subr.mxu0 0.0
    %585 = vmatpush1.msra.mxu0 0.0
    %586 = vmatprep.subr.mxu0 0.0
    %587 = vmatpush1.msra.mxu0 0.0
    %588 = vmatprep.subr.mxu0 0.0
    %589 = vmatpush1.msra.mxu0 0.0
    %590 = vmatprep.subr.mxu0 0.0
    %591 = vmatpush1.msra.mxu0 0.0
    %592 = vmatprep.subr.mxu0 0.0
    %593 = vmatpush1.msra.mxu0 0.0
    %594 = vmatprep.subr.mxu0 0.0
    %595 = vmatpush1.msra.mxu0 0.0
    %596 = vmatprep.subr.mxu0 0.0
    %597 = vmatpush1.msra.mxu0 0.0
    %598 = vmatprep.subr.mxu0 0.0
    %599 = vmatpush1.msra.mxu0 0.0
    %600 = vmatprep.subr.mxu0 0.0
    %601 = vmatpush1.msra.mxu0 0.0
    %602 = vmatprep.subr.mxu0 0.0
    %603 = vmatpush1.msra.mxu0 0.0
    %604 = vmatprep.subr.mxu0 0.0
    %605 = vmatpush1.msra.mxu0 0.0
    %606 = vmatprep.subr.mxu0 0.0
    %607 = vmatpush1.msra.mxu0 0.0
    %608 = vmatprep.subr.mxu0 0.0
    %609 = vmatpush1.msra.mxu0 0.0
    %610 = vmatprep.subr.mxu0 0.0
    %611 = vmatpush1.msra.mxu0 %v574
    %612 = vmatprep.subr.mxu0 0.0
    %613 = vmatpush1.msra.mxu0 %v573
    %614 = vmatprep.subr.mxu0 0.0
    %615 = vmatpush2.msra.mxu0 0.0
    %616 = vmatprep.subr.mxu0 0.0
    %617 = vmatpush2.msra.mxu0 0.0
    %618 = vmatprep.subr.mxu0 0.0
    %619 = vmatpush2.msra.mxu0 0.0
    %620 = vmatprep.subr.mxu0 0.0
    %621 = vmatpush2.msra.mxu0 0.0
    %622 = vmatprep.subr.mxu0 0.0
    %623 = vmatpush2.msra.mxu0 0.0
    %624 = vmatprep.subr.mxu0 0.0
    %625 = vmatpush2.msra.mxu0 0.0
    %626 = vmatprep.subr.mxu0 0.0
    %627 = vmatpush2.msra.mxu0 0.0
    %628 = vmatprep.subr.mxu0 0.0
    %629 = vmatpush2.msra.mxu0 0.0
    %630 = vmatprep.subr.mxu0 0.0
    %631 = vmatpush2.msra.mxu0 0.0
    %632 = vmatprep.subr.mxu0 0.0
    %633 = vmatpush2.msra.mxu0 0.0
    %634 = vmatprep.subr.mxu0 0.0
    %635 = vmatpush2.msra.mxu0 0.0
    %636 = vmatprep.subr.mxu0 0.0
    %637 = vmatpush2.msra.mxu0 0.0
    %638 = vmatprep.subr.mxu0 0.0
    %639 = vmatpush2.msra.mxu0 0.0
    %640 = vmatprep.subr.mxu0 0.0
    %641 = vmatpush2.msra.mxu0 0.0
    %642 = vmatprep.subr.mxu0 0.0
    %643 = vmatpush2.msra.mxu0 0.0
    %644 = vmatprep.subr.mxu0 0.0
    %645 = vmatpush2.msra.mxu0 0.0
    %646 = vmatprep.mubr.f32.mxu0 0.0
    %647 = vmatmul.mubr.f32.gmra.mxu0 %v577
    %v648 = vpop.f32.mrf.mxu0
    %v649 = vadd.f32 0.0, %v648
    %v650 = vpop.f32.mrf.mxu0
    %651 = vmatprep.mubr.f32.mxu0 0.0
    %652 = vmatmul.mubr.f32.gmra.mxu0 %v580
    %v653 = vpop.f32.mrf.mxu0
    %v654 = vadd.f32 0.0, %v653
    %v655 = vpop.f32.mrf.mxu0
    %656 = vdwg.mxu0
    %657 = vrot.lane.b32.xlu0 %v571, 112
    %v658 = vpop.permute.xlu0 %657
    %659 = vrot.lane.b32.xlu0 %v572, 112
    %v660 = vpop.permute.xlu0 %659
    %v663 = vsel %vm575, %v658, %v571
    %v664 = vsel %vm575, %v660, %v572
    %v665 = vmul.f32 %v649, %v663
    %v666 = vmul.f32 %v654, %v664
    %v667 = vld [vmem:[#allocation7] sm:$0xff]
    %v668 = vld [vmem:[#allocation7 + $0x8] sm:$0xff]
    %v669 = vld [vmem:[#allocation7 + $0x10] sm:$0xff]
    %v670 = vld [vmem:[#allocation7 + $0x18] sm:$0xff]
    %v671 = vld [vmem:[#allocation7 + $0x20] sm:$0xff]
    %v672 = vld [vmem:[#allocation7 + $0x28] sm:$0xff]
    %v673 = vld [vmem:[#allocation7 + $0x30] sm:$0xff]
    %v674 = vld [vmem:[#allocation7 + $0x38] sm:$0xff]
    %v675 = vsel %vm100, %v571, 0
    %v677 = vsel %vm100, %v572, 0
    %679 = vmatprep.subr.mxu0 0.0
    %680 = vmatpush1.msra.mxu0 0.0
    %681 = vmatprep.subr.mxu0 0.0
    %682 = vmatpush1.msra.mxu0 0.0
    %683 = vmatprep.subr.mxu0 0.0
    %684 = vmatpush1.msra.mxu0 0.0
    %685 = vmatprep.subr.mxu0 0.0
    %686 = vmatpush1.msra.mxu0 0.0
    %687 = vmatprep.subr.mxu0 0.0
    %688 = vmatpush1.msra.mxu0 0.0
    %689 = vmatprep.subr.mxu0 0.0
    %690 = vmatpush1.msra.mxu0 0.0
    %691 = vmatprep.subr.mxu0 0.0
    %692 = vmatpush1.msra.mxu0 0.0
    %693 = vmatprep.subr.mxu0 0.0
    %694 = vmatpush1.msra.mxu0 0.0
    %695 = vmatprep.subr.mxu0 0.0
    %696 = vmatpush1.msra.mxu0 0.0
    %697 = vmatprep.subr.mxu0 0.0
    %698 = vmatpush1.msra.mxu0 0.0
    %699 = vmatprep.subr.mxu0 0.0
    %700 = vmatpush1.msra.mxu0 0.0
    %701 = vmatprep.subr.mxu0 0.0
    %702 = vmatpush1.msra.mxu0 0.0
    %703 = vmatprep.subr.mxu0 0.0
    %704 = vmatpush1.msra.mxu0 %v674
    %705 = vmatprep.subr.mxu0 0.0
    %706 = vmatpush1.msra.mxu0 %v673
    %707 = vmatprep.subr.mxu0 0.0
    %708 = vmatpush1.msra.mxu0 %v672
    %709 = vmatprep.subr.mxu0 0.0
    %710 = vmatpush1.msra.mxu0 %v671
    %711 = vmatprep.subr.mxu0 0.0
    %712 = vmatpush2.msra.mxu0 0.0
    %713 = vmatprep.subr.mxu0 0.0
    %714 = vmatpush2.msra.mxu0 0.0
    %715 = vmatprep.subr.mxu0 0.0
    %716 = vmatpush2.msra.mxu0 0.0
    %717 = vmatprep.subr.mxu0 0.0
    %718 = vmatpush2.msra.mxu0 0.0
    %719 = vmatprep.subr.mxu0 0.0
    %720 = vmatpush2.msra.mxu0 0.0
    %721 = vmatprep.subr.mxu0 0.0
    %722 = vmatpush2.msra.mxu0 0.0
    %723 = vmatprep.subr.mxu0 0.0
    %724 = vmatpush2.msra.mxu0 0.0
    %725 = vmatprep.subr.mxu0 0.0
    %726 = vmatpush2.msra.mxu0 0.0
    %727 = vmatprep.subr.mxu0 0.0
    %728 = vmatpush2.msra.mxu0 0.0
    %729 = vmatprep.subr.mxu0 0.0
    %730 = vmatpush2.msra.mxu0 0.0
    %731 = vmatprep.subr.mxu0 0.0
    %732 = vmatpush2.msra.mxu0 0.0
    %733 = vmatprep.subr.mxu0 0.0
    %734 = vmatpush2.msra.mxu0 0.0
    %735 = vmatprep.subr.mxu0 0.0
    %736 = vmatpush2.msra.mxu0 0.0
    %737 = vmatprep.subr.mxu0 0.0
    %738 = vmatpush2.msra.mxu0 0.0
    %739 = vmatprep.subr.mxu0 0.0
    %740 = vmatpush2.msra.mxu0 0.0
    %741 = vmatprep.subr.mxu0 0.0
    %742 = vmatpush2.msra.mxu0 0.0
    %743 = vmatprep.mubr.f32.mxu0 0.0
    %744 = vmatmul.mubr.f32.gmra.mxu0 %v675
    %v745 = vpop.f32.mrf.mxu0
    %v746 = vadd.f32 0.0, %v745
    %v747 = vpop.f32.mrf.mxu0
    %748 = vmatprep.mubr.f32.mxu0 0.0
    %749 = vmatmul.mubr.f32.gmra.mxu0 %v677
    %v750 = vpop.f32.mrf.mxu0
    %v751 = vadd.f32 0.0, %v750
    %v752 = vpop.f32.mrf.mxu0
    %753 = vdwg.mxu0
    %v755 = vsel %vm100, %v665, 0
    %v758 = vsel %vm100, %v666, 0
    %760 = vmatprep.subr.mxu0 0.0
    %761 = vmatpush1.msra.mxu0 0.0
    %762 = vmatprep.subr.mxu0 0.0
    %763 = vmatpush1.msra.mxu0 0.0
    %764 = vmatprep.subr.mxu0 0.0
    %765 = vmatpush1.msra.mxu0 0.0
    %766 = vmatprep.subr.mxu0 0.0
    %767 = vmatpush1.msra.mxu0 0.0
    %768 = vmatprep.subr.mxu0 0.0
    %769 = vmatpush1.msra.mxu0 0.0
    %770 = vmatprep.subr.mxu0 0.0
    %771 = vmatpush1.msra.mxu0 0.0
    %772 = vmatprep.subr.mxu0 0.0
    %773 = vmatpush1.msra.mxu0 0.0
    %774 = vmatprep.subr.mxu0 0.0
    %775 = vmatpush1.msra.mxu0 0.0
    %776 = vmatprep.subr.mxu0 0.0
    %777 = vmatpush1.msra.mxu0 0.0
    %778 = vmatprep.subr.mxu0 0.0
    %779 = vmatpush1.msra.mxu0 0.0
    %780 = vmatprep.subr.mxu0 0.0
    %781 = vmatpush1.msra.mxu0 0.0
    %782 = vmatprep.subr.mxu0 0.0
    %783 = vmatpush1.msra.mxu0 0.0
    %784 = vmatprep.subr.mxu0 0.0
    %785 = vmatpush1.msra.mxu0 %v670
    %786 = vmatprep.subr.mxu0 0.0
    %787 = vmatpush1.msra.mxu0 %v669
    %788 = vmatprep.subr.mxu0 0.0
    %789 = vmatpush1.msra.mxu0 %v668
    %790 = vmatprep.subr.mxu0 0.0
    %791 = vmatpush1.msra.mxu0 %v667
    %792 = vmatprep.subr.mxu0 0.0
    %793 = vmatpush2.msra.mxu0 0.0
    %794 = vmatprep.subr.mxu0 0.0
    %795 = vmatpush2.msra.mxu0 0.0
    %796 = vmatprep.subr.mxu0 0.0
    %797 = vmatpush2.msra.mxu0 0.0
    %798 = vmatprep.subr.mxu0 0.0
    %799 = vmatpush2.msra.mxu0 0.0
    %800 = vmatprep.subr.mxu0 0.0
    %801 = vmatpush2.msra.mxu0 0.0
    %802 = vmatprep.subr.mxu0 0.0
    %803 = vmatpush2.msra.mxu0 0.0
    %804 = vmatprep.subr.mxu0 0.0
    %805 = vmatpush2.msra.mxu0 0.0
    %806 = vmatprep.subr.mxu0 0.0
    %807 = vmatpush2.msra.mxu0 0.0
    %808 = vmatprep.subr.mxu0 0.0
    %809 = vmatpush2.msra.mxu0 0.0
    %810 = vmatprep.subr.mxu0 0.0
    %811 = vmatpush2.msra.mxu0 0.0
    %812 = vmatprep.subr.mxu0 0.0
    %813 = vmatpush2.msra.mxu0 0.0
    %814 = vmatprep.subr.mxu0 0.0
    %815 = vmatpush2.msra.mxu0 0.0
    %816 = vmatprep.subr.mxu0 0.0
    %817 = vmatpush2.msra.mxu0 0.0
    %818 = vmatprep.subr.mxu0 0.0
    %819 = vmatpush2.msra.mxu0 0.0
    %820 = vmatprep.subr.mxu0 0.0
    %821 = vmatpush2.msra.mxu0 0.0
    %822 = vmatprep.subr.mxu0 0.0
    %823 = vmatpush2.msra.mxu0 0.0
    %824 = vmatprep.mubr.f32.mxu0 0.0
    %825 = vmatmul.mubr.f32.gmra.mxu0 %v755
    %v826 = vpop.f32.mrf.mxu0
    %v827 = vadd.f32 %v746, %v826
    %v828 = vpop.f32.mrf.mxu0
    %829 = vmatprep.mubr.f32.mxu0 0.0
    %830 = vmatmul.mubr.f32.gmra.mxu0 %v758
    %v831 = vpop.f32.mrf.mxu0
    %v832 = vadd.f32 %v751, %v831
    %v833 = vpop.f32.mrf.mxu0
    %834 = vdwg.mxu0
    %v835 = vlaneseq
    %v836 = vshrl.u32 %v835, 7
    %v837 = vsub.s32 2, %v836
    %v838 = vrot.slane %v95, %v837
    %v839 = vadd.f32 %v827, %v838
    %v840 = vadd.f32 %v832, %v838
    %841 = vst [vmem:[%s9] sm:$0xff] %v839
    %842 = vst [vmem:[%s9 + $0x8] sm:$0xff] %v840
    // Predicated region
    $region54: #{_logits_and_loss.1} parent=1 // pred_check
      _
    $region55: #{_logits_and_loss.1} parent=1 // pred_check_branch
      %844 = sbr.rel (0) target = $region57
    $region56: #{_logits_and_loss.1} parent=1 // pred_region
      _
    $region57: #{_logits_and_loss.1} parent=1 // pred_fallthru
      _
    // Predicated region
    $region58: #{_logits_and_loss.1} parent=1 // pred_check
      _
    $region59: #{_logits_and_loss.1} parent=1 // pred_check_branch
      %846 = sbr.rel (0) target = $region61
    $region60: #{_logits_and_loss.1} parent=1 // pred_region
      _
    $region61: #{_logits_and_loss.1} parent=1 // pred_fallthru
      _
    %847 = vsyncpa [#allocation3], 1
    %848 = vsyncpa [#allocation5], 1
    %849 = vsyncpa [#allocation8], 1

</llo_original>
